<compile_context>
chip_gen: v6e
topology: v6e:2x2x1
jax: 0.10.0
libtpu: 0.0.40
codegen_flags: <defaults>
</compile_context>

<pallas_src>
import jax
import jax.numpy as jnp
from jax import lax
from jax.experimental import pallas as pl
from jax.experimental.pallas import tpu as pltpu

_LANES = 128
_SUBLANES = 8
_TILE_MAX = 4096
_TILE_MIN = 256
# Double-buffered (x-block + out-block) VMEM budget for the gridded path.
# Sized against the smallest scoped-VMEM default (16 MiB on v5e) with headroom
# for the resident W/b and compiler temporaries.
_TILE_VMEM_BUDGET = 8 * 1024 * 1024


def _round_up(n, m):
    return ((n + m - 1) // m) * m


def _round_down(n, m):
    return (n // m) * m


def _linear_kernel(x_ref, w_ref, b_ref, o_ref):
    # x_ref: [B, D_in]; w_ref: [D_out, D_in]; b_ref: [1, D_out]; o_ref: [B, D_out]
    # Contract x dim 1 with w dim 1 (== x @ W^T); the MXU consumes the transposed
    # RHS directly, so there is no in-kernel relayout of the weights.
    acc = lax.dot_general(
        x_ref[...], w_ref[...],
        dimension_numbers=(((1,), (1,)), ((), ())),
        preferred_element_type=jnp.float32,
    )
    o_ref[...] = (acc + b_ref[...].astype(jnp.float32)).astype(o_ref.dtype)


def _pick_batch_tile(input_dim, output_dim, itemsize):
    # VMEM footprint per batch row (lane axis padded to 128), double-buffered
    # input + output blocks.
    lanes_in = _round_up(input_dim, _LANES)
    lanes_out = _round_up(output_dim, _LANES)
    per_row = 2 * (lanes_in + lanes_out) * itemsize
    tile = _round_down(_TILE_VMEM_BUDGET // per_row, _SUBLANES)
    return int(max(_TILE_MIN, min(_TILE_MAX, tile)))


def quantile_regression_forward(x, w, b, *, batch_tile=None):
    """y = x @ W^T + b, mirroring torch.nn.Linear(input_dim, output_dim)."""
    batch, input_dim = x.shape
    output_dim = w.shape[0]
    b2 = b.reshape(1, output_dim)

    x_isz = jnp.dtype(x.dtype).itemsize
    w_isz = jnp.dtype(w.dtype).itemsize
    b_isz = jnp.dtype(b.dtype).itemsize

    tile = batch_tile if batch_tile is not None else _pick_batch_tile(
        input_dim, output_dim, x_isz)

    # Conservative VMEM footprints (lane axis padded to 128, sublanes to 8).
    lanes_in = _round_up(input_dim, _LANES)
    lanes_out = _round_up(output_dim, _LANES)
    w_bytes = _round_up(output_dim, _SUBLANES) * lanes_in * w_isz
    b_bytes = _SUBLANES * lanes_out * b_isz

    cost = pl.CostEstimate(
        flops=2 * batch * input_dim * output_dim,
        transcendentals=0,
        bytes_accessed=(x.size * x_isz + w.size * w_isz + b.size * b_isz
                        + batch * output_dim * x_isz),
    )
    out_shape = jax.ShapeDtypeStruct((batch, output_dim), x.dtype)

    if batch <= tile:
        # Single-shot path: no grid, whole operands resident in VMEM.
        resident = (_round_up(batch, _SUBLANES) * (lanes_in + lanes_out) * x_isz
                    + w_bytes + b_bytes)
        vmem_limit = int(min(48 << 20, max(2 * resident, 8 << 20)))
        return pl.pallas_call(
            _linear_kernel,
            out_shape=out_shape,
            in_specs=[
                pl.BlockSpec(memory_space=pltpu.MemorySpace.VMEM),
                pl.BlockSpec(memory_space=pltpu.MemorySpace.VMEM),
                pl.BlockSpec(memory_space=pltpu.MemorySpace.VMEM),
            ],
            out_specs=pl.BlockSpec(memory_space=pltpu.MemorySpace.VMEM),
            compiler_params=pltpu.CompilerParams(vmem_limit_bytes=vmem_limit),
            cost_estimate=cost,
        )(x, w, b2)

    # Gridded path: batch-only grid (Pallas handles a ragged last block), W/b
    # stay resident via constant index_maps, and the batch axis is "parallel"
    # so with >=2 grid steps both v7x TensorCores stream independent halves.
    footprint = 2 * tile * (lanes_in + lanes_out) * x_isz + w_bytes + b_bytes
    vmem_limit = int(min(48 << 20, max(2 * footprint, 8 << 20)))
    return pl.pallas_call(
        _linear_kernel,
        out_shape=out_shape,
        grid=(pl.cdiv(batch, tile),),
        in_specs=[
            pl.BlockSpec((tile, input_dim), lambda i: (i, 0)),
            pl.BlockSpec((output_dim, input_dim), lambda i: (0, 0)),
            pl.BlockSpec((1, output_dim), lambda i: (0, 0)),
        ],
        out_specs=pl.BlockSpec((tile, output_dim), lambda i: (i, 0)),
        compiler_params=pltpu.CompilerParams(
            dimension_semantics=("parallel",),
            vmem_limit_bytes=vmem_limit,
        ),
        cost_estimate=cost,
    )(x, w, b2)


if __name__ == "__main__":
    # The reference module relies on globals `input_dim` / `output_dim`;
    # choose small deterministic values consistent with a quantile head.
    batch = 8
    input_dim = 32
    output_dim = 8  # e.g. 8 predicted quantiles

    key = jax.random.PRNGKey(0)
    kx, kw, kb, kx2 = jax.random.split(key, 4)

    x = jax.random.normal(kx, (batch, input_dim), dtype=jnp.float32)
    # Deterministic parameter init (mimics nn.Linear uniform(-1/sqrt(fan_in), 1/sqrt(fan_in)))
    bound = 1.0 / jnp.sqrt(jnp.float32(input_dim))
    w = jax.random.uniform(kw, (output_dim, input_dim), dtype=jnp.float32,
                           minval=-bound, maxval=bound)
    b = jax.random.uniform(kb, (output_dim,), dtype=jnp.float32,
                           minval=-bound, maxval=bound)

    # Single-shot (gridless) path.
    out = quantile_regression_forward(x, w, b)
    jax.block_until_ready(out)
    ref = x @ w.T + b[None, :]
    assert out.shape == (batch, output_dim)
    assert jnp.allclose(out, ref, atol=1e-5, rtol=1e-5)

    # Gridded path (forced small tile so it runs at small shapes): 3 batch blocks.
    batch2 = 48
    x2 = jax.random.normal(kx2, (batch2, input_dim), dtype=jnp.float32)
    out2 = quantile_regression_forward(x2, w, b, batch_tile=16)
    jax.block_until_ready(out2)
    ref2 = x2 @ w.T + b[None, :]
    assert out2.shape == (batch2, output_dim)
    assert jnp.allclose(out2, ref2, atol=1e-5, rtol=1e-5)

    print("KERNEL_OK")
</pallas_src>

<mosaic_0001>
module attributes {stable_mosaic.version = 11 : i64} {
  func.func @_linear_kernel(%arg0: memref<8x32xf32, #tpu.memory_space<vmem>>, %arg1: memref<8x32xf32, #tpu.memory_space<vmem>>, %arg2: memref<1x8xf32, #tpu.memory_space<vmem>>, %arg3: memref<8x8xf32, #tpu.memory_space<vmem>>) attributes {dimension_semantics = [], scalar_prefetch = 0 : i64, scratch_operands = 0 : i64, tpu.core_type = #tpu.core_type<tc>} {
    %c0 = arith.constant 0 : index
    %c0_0 = arith.constant 0 : index
    %0 = vector.load %arg0[%c0, %c0_0] : memref<8x32xf32, #tpu.memory_space<vmem>>, vector<8x32xf32>
    %c0_1 = arith.constant 0 : index
    %c0_2 = arith.constant 0 : index
    %1 = vector.load %arg1[%c0_1, %c0_2] : memref<8x32xf32, #tpu.memory_space<vmem>>, vector<8x32xf32>
    %cst = arith.constant dense<0.000000e+00> : vector<8x8xf32>
    %2 = tpu.matmul %0, %1, %cst {dimension_numbers = #tpu.dot_dimension_numbers<[1], [1], [0], [0], [0, 0, 1, 0], [], []>} : vector<8x32xf32>, vector<8x32xf32>, vector<8x8xf32> -> vector<8x8xf32>
    %c0_3 = arith.constant 0 : index
    %c0_4 = arith.constant 0 : index
    %3 = vector.load %arg2[%c0_3, %c0_4] : memref<1x8xf32, #tpu.memory_space<vmem>>, vector<1x8xf32>
    %4 = vector.broadcast %3 : vector<1x8xf32> to vector<8x8xf32>
    %5 = arith.addf %2, %4 : vector<8x8xf32>
    %c0_5 = arith.constant 0 : index
    %c0_6 = arith.constant 0 : index
    %6 = vector.load %arg3[%c0_5, %c0_6] : memref<8x8xf32, #tpu.memory_space<vmem>>, vector<8x8xf32>
    tpu.vector_store %arg3[%c0_5, %c0_6], %5 {strides = array<i32>} : memref<8x8xf32, #tpu.memory_space<vmem>>, vector<8x8xf32>,
    return
  }
}

</mosaic_0001>

<llo_original>
// kernel: tpu_custom_call.1
$region0: #{tpu_custom_call.1}
  #allocation0 [shape = 'u32[]', space=smem, size = 0x4, offset = 0x4, fixed_abs, tag = 'smem constant byte address 0x4 - core index']
  #allocation1 [shape = 'u32[144,128]{1,0:T(1,128)}', space=vmem, size = 0x12000, scoped, tag = 'internal scratch']
  %s0 = inlined_call_operand.hbm [shape: f32[8,32], index: 0, kind: input, shape index: {}]
  %s1 = inlined_call_operand.hbm [shape: f32[8,32], index: 1, kind: input, shape index: {}]
  %s2 = inlined_call_operand.vmem [shape: f32[1,8], index: 2, kind: input, shape index: {}]
  %s3 = inlined_call_operand.hbm [shape: f32[8,8], index: 3, kind: output, shape index: {}]
  %s4 = sld [smem:[#allocation0]]
  $region30: #{tpu_custom_call.1} parent=0
    _
  %s6 = ssub.s32 1, %s4
  %s7 = scalar_select 0, %s6, %s4
  $region1: #{tpu_custom_call.1} parent=0
    #allocation2 [shape = 'u8[4096]{0}', space=vmem, size = 0x1000, scoped, tag = 'input window, operand 0, single buffered']
    #allocation3 [shape = 's32[1]{0}', space=sflag, size = 0x4, scoped, tag = 'scoped memory for tpu_custom_call.1']
    #allocation4 [shape = 's32[1]{0}', space=sflag, size = 0x4, scoped, tag = 'scoped memory for tpu_custom_call.1']
    #allocation5 [shape = 'u8[4096]{0}', space=vmem, size = 0x1000, scoped, tag = 'input window, operand 1, single buffered']
    #allocation6 [shape = 's32[1]{0}', space=sflag, size = 0x4, scoped, tag = 'scoped memory for tpu_custom_call.1']
    #allocation7 [shape = 'u8[4096]{0}', space=vmem, size = 0x1000, scoped, tag = 'output window, operand 0, single buffered']
    %8 = vsyncpa [#allocation3], 0
    %9 = vsyncpa [#allocation6], 0
    %10 = vsyncpa [#allocation4], 0
    // Predicated region
    $region2: #{tpu_custom_call.1} parent=1 // pred_check
      _
    $region3: #{tpu_custom_call.1} parent=1 // pred_check_branch
      %12 = sbr.rel (0) target = $region5
    $region4: #{tpu_custom_call.1} parent=1 // pred_region
      %s14 = ssub.s32 128, 128
      %15 = vsyncadd [#allocation3], %s14
      %s17 = sshll.u32 [#allocation2], 4
      %s18 = int_to_ptr.vmem [resolvable:$true] %s17
      %20 = dma.hbm_to_vmem [thread:$0]  %s0, 128, %s18, [#allocation3]
    $region5: #{tpu_custom_call.1} parent=1 // pred_fallthru
      _
    // Predicated region
    $region6: #{tpu_custom_call.1} parent=1 // pred_check
      _
    $region7: #{tpu_custom_call.1} parent=1 // pred_check_branch
      %22 = sbr.rel (0) target = $region9
    $region8: #{tpu_custom_call.1} parent=1 // pred_region
      %s24 = ssub.s32 128, 128
      %25 = vsyncadd [#allocation6], %s24
      %s27 = sshll.u32 [#allocation5], 4
      %s28 = int_to_ptr.vmem [resolvable:$true] %s27
      %30 = dma.hbm_to_vmem [thread:$0]  %s1, 128, %s28, [#allocation6]
    $region9: #{tpu_custom_call.1} parent=1 // pred_fallthru
      _
    // Predicated region
    $region10: #{tpu_custom_call.1} parent=1 // pred_check
      _
    $region11: #{tpu_custom_call.1} parent=1 // pred_check_branch
      %32 = sbr.rel (0) target = $region13
    $region12: #{tpu_custom_call.1} parent=1 // pred_region
      _
    $region13: #{tpu_custom_call.1} parent=1 // pred_fallthru
      _
    // Predicated region
    $region14: #{tpu_custom_call.1} parent=1 // pred_check
      _
    $region15: #{tpu_custom_call.1} parent=1 // pred_check_branch
      %34 = sbr.rel (0) target = $region17
    $region16: #{tpu_custom_call.1} parent=1 // pred_region
      %35 = dma.done [#allocation3], 128
    $region17: #{tpu_custom_call.1} parent=1 // pred_fallthru
      _
    // Predicated region
    $region18: #{tpu_custom_call.1} parent=1 // pred_check
      _
    $region19: #{tpu_custom_call.1} parent=1 // pred_check_branch
      %37 = sbr.rel (0) target = $region21
    $region20: #{tpu_custom_call.1} parent=1 // pred_region
      %38 = dma.done [#allocation6], 128
    $region21: #{tpu_custom_call.1} parent=1 // pred_fallthru
      _
    %v39 = vld [vmem:[#allocation2] sm:$0xff]
    %v40 = vld [vmem:[#allocation5] sm:$0xff]
    %v41 = vld [vmem:[%s2] sm:$0x1]
    %v43 = vlaneseq
    %v44 = vshrl.u32 %v43, 7
    %v45 = vsub.s32 0, %v44
    %v46 = vrot.slane %v41, %v45
    %vm48 = vcmask 261120
    %v50 = vsel %vm48, %v39, 0
    %v53 = vsel %vm48, %v40, 0
    %55 = vmatprep.subr.mxu0 0.0
    %56 = vmatpush1.xpose.msra.mxu0 0.0
    %57 = vmatprep.subr.mxu0 0.0
    %58 = vmatpush1.xpose.msra.mxu0 0.0
    %59 = vmatprep.subr.mxu0 0.0
    %60 = vmatpush1.xpose.msra.mxu0 0.0
    %61 = vmatprep.subr.mxu0 0.0
    %62 = vmatpush1.xpose.msra.mxu0 0.0
    %63 = vmatprep.subr.mxu0 0.0
    %64 = vmatpush1.xpose.msra.mxu0 0.0
    %65 = vmatprep.subr.mxu0 0.0
    %66 = vmatpush1.xpose.msra.mxu0 0.0
    %67 = vmatprep.subr.mxu0 0.0
    %68 = vmatpush1.xpose.msra.mxu0 0.0
    %69 = vmatprep.subr.mxu0 0.0
    %70 = vmatpush1.xpose.msra.mxu0 0.0
    %71 = vmatprep.subr.mxu0 0.0
    %72 = vmatpush1.xpose.msra.mxu0 0.0
    %73 = vmatprep.subr.mxu0 0.0
    %74 = vmatpush1.xpose.msra.mxu0 0.0
    %75 = vmatprep.subr.mxu0 0.0
    %76 = vmatpush1.xpose.msra.mxu0 0.0
    %77 = vmatprep.subr.mxu0 0.0
    %78 = vmatpush1.xpose.msra.mxu0 0.0
    %79 = vmatprep.subr.mxu0 0.0
    %80 = vmatpush1.xpose.msra.mxu0 0.0
    %81 = vmatprep.subr.mxu0 0.0
    %82 = vmatpush1.xpose.msra.mxu0 0.0
    %83 = vmatprep.subr.mxu0 0.0
    %84 = vmatpush1.xpose.msra.mxu0 0.0
    %85 = vmatprep.subr.mxu0 0.0
    %86 = vmatpush1.xpose.msra.mxu0 %v53
    %87 = vmatprep.subr.mxu0 0.0
    %88 = vmatpush2.xpose.msra.mxu0 0.0
    %89 = vmatprep.subr.mxu0 0.0
    %90 = vmatpush2.xpose.msra.mxu0 0.0
    %91 = vmatprep.subr.mxu0 0.0
    %92 = vmatpush2.xpose.msra.mxu0 0.0
    %93 = vmatprep.subr.mxu0 0.0
    %94 = vmatpush2.xpose.msra.mxu0 0.0
    %95 = vmatprep.subr.mxu0 0.0
    %96 = vmatpush2.xpose.msra.mxu0 0.0
    %97 = vmatprep.subr.mxu0 0.0
    %98 = vmatpush2.xpose.msra.mxu0 0.0
    %99 = vmatprep.subr.mxu0 0.0
    %100 = vmatpush2.xpose.msra.mxu0 0.0
    %101 = vmatprep.subr.mxu0 0.0
    %102 = vmatpush2.xpose.msra.mxu0 0.0
    %103 = vmatprep.subr.mxu0 0.0
    %104 = vmatpush2.xpose.msra.mxu0 0.0
    %105 = vmatprep.subr.mxu0 0.0
    %106 = vmatpush2.xpose.msra.mxu0 0.0
    %107 = vmatprep.subr.mxu0 0.0
    %108 = vmatpush2.xpose.msra.mxu0 0.0
    %109 = vmatprep.subr.mxu0 0.0
    %110 = vmatpush2.xpose.msra.mxu0 0.0
    %111 = vmatprep.subr.mxu0 0.0
    %112 = vmatpush2.xpose.msra.mxu0 0.0
    %113 = vmatprep.subr.mxu0 0.0
    %114 = vmatpush2.xpose.msra.mxu0 0.0
    %115 = vmatprep.subr.mxu0 0.0
    %116 = vmatpush2.xpose.msra.mxu0 0.0
    %117 = vmatprep.subr.mxu0 0.0
    %118 = vmatpush2.xpose.msra.mxu0 0.0
    %119 = vmatprep.mubr.f32.mxu0 0.0
    %120 = vmatmul.mubr.f32.gmra.mxu0 %v50
    %v121 = vpop.f32.mrf.mxu0
    %v122 = vadd.f32 %v46, %v121
    %v123 = vpop.f32.mrf.mxu0
    %124 = vdwg.mxu0
    %vm125 = vcmask 64512
    %126 = vst.msk [vmem:[#allocation7] sm:$0xff] %vm125, %v122
    // Predicated region
    $region22: #{tpu_custom_call.1} parent=1 // pred_check
      _
    $region23: #{tpu_custom_call.1} parent=1 // pred_check_branch
      %128 = sbr.rel (0) target = $region25
    $region24: #{tpu_custom_call.1} parent=1 // pred_region
      %s130 = ssub.s32 128, 128
      %131 = vsyncadd [#allocation4], %s130
      %s133 = sshll.u32 [#allocation7], 4
      %s134 = int_to_ptr.vmem [resolvable:$true] %s133
      %136 = dma.vmem_to_hbm [thread:$0]  %s134, 128, %s3, [#allocation4]
    $region25: #{tpu_custom_call.1} parent=1 // pred_fallthru
      _
    // Predicated region
    $region26: #{tpu_custom_call.1} parent=1 // pred_check
      _
    $region27: #{tpu_custom_call.1} parent=1 // pred_check_branch
      %138 = sbr.rel (0) target = $region29
    $region28: #{tpu_custom_call.1} parent=1 // pred_region
      %139 = dma.done [#allocation4], 128
    $region29: #{tpu_custom_call.1} parent=1 // pred_fallthru
      _
    %140 = vsyncpa [#allocation3], 1
    %141 = vsyncpa [#allocation6], 1
    %142 = vsyncpa [#allocation4], 1

</llo_original>
